<compile_context>
chip_gen: v7x
topology: tpu7x:2x2x1
jax: 0.10.0
libtpu: 0.0.40
codegen_flags: <defaults>
</compile_context>

<pallas_src>
import functools

import jax
import jax.numpy as jnp
import numpy as np
from jax.experimental import pallas as pl
from jax.experimental.pallas import tpu as pltpu

# Scoped-VMEM budget: large enough to lift v5e/v6e's small scoped defaults
# (16/32 MiB) while leaving ~16 MiB headroom under v7x's 64 MiB physical VMEM.
_VMEM_LIMIT = 48 * 1024 * 1024


def _round_up(a, b):
    return (a + b - 1) // b * b


def _itemsize(dt):
    return jnp.dtype(dt).itemsize


def _pick_t_tile(t_len, bytes_per_col, *, max_tile=512, budget=16 * 1024 * 1024):
    """Largest lane-dense (multiple-of-128) time tile whose double-buffered
    per-step working set stays within `budget` (VMEM-/channel-aware)."""
    tile = min(max_tile, _round_up(max(int(t_len), 1), 128))
    while tile > 128 and 2 * bytes_per_col * tile > budget:
        tile = _round_up(tile // 2, 128)
    return tile


# -----------------------------------------------------------------------------
# Pass 1: conv (folded-K MXU matmul / depthwise FMA) for one-or-two weight sets
# sharing the same input + per-tile GroupNorm partial statistics.
# -----------------------------------------------------------------------------
def _conv_stats_kernel(x_ref, w_ref, y_ref, stats_ref, *, n_valid, depthwise, n_branch):
    # x_ref    : (1, C_in*K, Tt)  im2col (groups=1)   OR  (1, K, C, Tt) tap-stack (depthwise)
    # w_ref    : (n_branch, C_out, C_in*K)            OR  (n_branch, C, K)
    # y_ref    : (1, n_branch, C_out, Tt)   raw conv outputs (store dtype), padded cols zeroed
    # stats_ref: (1, 1, 8, Tt) f32  per-lane partials; row 2*br = sum_c(y), 2*br+1 = sum_c(y^2)
    j = pl.program_id(1)
    tt = y_ref.shape[-1]
    c_out = y_ref.shape[2]

    col = j * tt + jax.lax.broadcasted_iota(jnp.int32, (c_out, tt), 1)
    valid = col < n_valid

    row = jax.lax.broadcasted_iota(jnp.int32, (8, tt), 0)
    acc = jnp.zeros((8, tt), jnp.float32)

    for br in range(n_branch):
        if depthwise:
            w = w_ref[br].astype(jnp.float32)                        # (C, K)
            n_taps = x_ref.shape[1]
            y = w[:, 0:1] * x_ref[0, 0].astype(jnp.float32)
            for k in range(1, n_taps):                               # K static & small
                y = y + w[:, k : k + 1] * x_ref[0, k].astype(jnp.float32)
        else:
            # All K taps folded into a single MXU contraction (C_in*K); operands
            # may be bf16 (store_dtype), accumulation is always f32.
            y = jnp.dot(w_ref[br], x_ref[0], preferred_element_type=jnp.float32)

        # Mask lane-padding columns: keeps GroupNorm statistics exact and keeps
        # the padded columns feeding the pass-2 upsample matmul at exactly 0.
        y = jnp.where(valid, y, 0.0)
        y_ref[0, br] = y.astype(y_ref.dtype)

        # Per-lane partial stats (sublane reduce only; lane reduce finishes in XLA).
        s = jnp.sum(y, axis=0, keepdims=True)                        # (1, Tt)
        q = jnp.sum(y * y, axis=0, keepdims=True)                    # (1, Tt)
        acc = jnp.where(row == 2 * br, s, acc)
        acc = jnp.where(row == 2 * br + 1, q, acc)

    stats_ref[0, 0] = acc


def _conv_raw_stats(x, weights, *, groups, store_dtype, t_tile=None):
    """PyTorch-style Conv1d (padding=(K-1)//2, no bias) of `x` against every
    weight in `weights` (all branches share the same input -> x is read from
    HBM once), plus per-branch GroupNorm(1, C) sum / sum-of-squares.

    Returns (y, stats, t_padded, t_tile):
      y     : (B, n_branch, C_out, t_padded), store_dtype, zeros in padded cols
      stats : list of (ssum, ssq) per branch, each shape (B,), f32
    """
    B, c_in, T = x.shape
    n_branch = len(weights)
    c_out, c_in_g, K = weights[0].shape
    pad = (K - 1) // 2
    t_out = T + 2 * pad - K + 1          # stride 1

    depthwise = groups != 1
    if depthwise:
        assert groups == c_in == c_out and c_in_g == 1, "LA only uses groups in {1, C}"
    else:
        assert c_in_g == c_in

    # All shifting happens here in plain JAX; the kernel only sees contiguous
    # lane-dense tiles.
    x_pad = jnp.pad(x, ((0, 0), (0, 0), (pad, pad)))
    taps = [x_pad[:, :, k : k + t_out] for k in range(K)]
    if depthwise:
        # TODO(synk): for depthwise K>1 a halo'd manual-DMA window would avoid the
        # K-fold tap duplication; the typical LA config (K=1) never reaches here
        # (it takes the fully fused fast path in la_forward).
        xc = jnp.stack(taps, axis=1)                                      # (B, K, C, T_out)
        w2 = jnp.stack([w[:, 0, :] for w in weights], axis=0)             # (nb, C, K)
    else:
        xc = jnp.concatenate(taps, axis=1)                                # (B, C_in*K, T_out)
        w2 = jnp.stack(
            [jnp.transpose(w, (0, 2, 1)).reshape(c_out, c_in * K) for w in weights],
            axis=0)                                                       # (nb, C_out, C_in*K)

    # bf16 operands halve pass-1 input HBM traffic and use the bf16 MXU path;
    # accumulation stays f32 inside the kernel.  f32 store_dtype == no-op cast.
    xc = xc.astype(store_dtype)
    w2 = w2.astype(store_dtype)

    rows_x = c_in * K
    if t_tile is None:
        bpc = (rows_x * _itemsize(store_dtype)
               + n_branch * c_out * _itemsize(store_dtype)
               + 8 * 4)
        t_tile = _pick_t_tile(t_out, bpc)
    t_padded = _round_up(t_out, t_tile)
    n_t = t_padded // t_tile
    xc = jnp.pad(xc, [(0, 0)] * (xc.ndim - 1) + [(0, t_padded - t_out)])

    if depthwise:
        x_spec = pl.BlockSpec((1, K, c_out, t_tile), lambda b, j: (b, 0, 0, j))
        w_spec = pl.BlockSpec((n_branch, c_out, K), lambda b, j: (0, 0, 0))
    else:
        x_spec = pl.BlockSpec((1, rows_x, t_tile), lambda b, j: (b, 0, j))
        w_spec = pl.BlockSpec((n_branch, c_out, rows_x), lambda b, j: (0, 0, 0))

    kernel = functools.partial(_conv_stats_kernel, n_valid=t_out,
                               depthwise=depthwise, n_branch=n_branch)
    y, stats = pl.pallas_call(
        kernel,
        out_shape=(
            jax.ShapeDtypeStruct((B, n_branch, c_out, t_padded), store_dtype),
            jax.ShapeDtypeStruct((B, n_t, 8, t_tile), jnp.float32),
        ),
        grid=(B, n_t),
        in_specs=[x_spec, w_spec],
        out_specs=(
            pl.BlockSpec((1, n_branch, c_out, t_tile), lambda b, j: (b, 0, 0, j)),
            pl.BlockSpec((1, 1, 8, t_tile), lambda b, j: (b, j, 0, 0)),
        ),
        compiler_params=pltpu.CompilerParams(
            dimension_semantics=("parallel", "parallel"),
            vmem_limit_bytes=_VMEM_LIMIT,
        ),
    )(xc, w2)

    per_branch = []
    for br in range(n_branch):
        ssum = jnp.sum(stats[:, :, 2 * br, :], axis=(1, 2))      # (B,)
        ssq = jnp.sum(stats[:, :, 2 * br + 1, :], axis=(1, 2))   # (B,)
        per_branch.append((ssum, ssq))
    return y, per_branch, t_padded, t_tile


def _gn_scale_shift(ssum, ssq, count, gamma, beta, eps):
    """Fold GroupNorm(1, C) into per-(sample, channel) scale/shift: y*scale+shift."""
    mean = ssum / count
    # One-pass E[x^2] - E[x]^2 in f32; fine at these magnitudes.  Switch to a
    # shifted two-pass / Welford form if tolerances ever tighten.
    var = jnp.maximum(ssq / count - mean * mean, 0.0)
    inv = jax.lax.rsqrt(var + eps)
    scale = gamma[None, :].astype(jnp.float32) * inv[:, None]
    shift = beta[None, :].astype(jnp.float32) - mean[:, None] * scale
    return scale, shift


# -----------------------------------------------------------------------------
# Pass 2: in-kernel nearest upsample (one-hot selection matmul against the
# low-resolution tensors) + GroupNorm applies + sigmoid gate + final combine.
# -----------------------------------------------------------------------------
def _fuse_kernel(p_ref, yl_ref, yg_ref, sel_ref, o_ref, *, n_global):
    # p_ref  : (1, C, 128) f32 params; cols 0/1 local scale/shift, 2/3 gate, 4/5 global
    # yl_ref : (1, 1, C, Tt)            local-branch operand (conv output or raw x_l)
    # yg_ref : (1, n_global, C, Tg_pad) low-res global operand(s) (resident per sample)
    # sel_ref: (Tg_pad, Tt)             one-hot nearest-upsample selection matrix
    p = p_ref[0]
    yl = yl_ref[0, 0].astype(jnp.float32)
    sel = sel_ref[...]

    ya_up = jnp.dot(yg_ref[0, 0], sel, preferred_element_type=jnp.float32)
    if n_global == 2:
        yg_up = jnp.dot(yg_ref[0, 1], sel, preferred_element_type=jnp.float32)
    else:
        yg_up = ya_up           # depthwise K=1 fast path: both branches share raw x_g

    local_feat = yl * p[:, 0:1] + p[:, 1:2]
    gate = jax.nn.sigmoid(ya_up * p[:, 2:3] + p[:, 3:4])
    global_feat = yg_up * p[:, 4:5] + p[:, 5:6]
    o_ref[0] = (local_feat * gate + global_feat).astype(o_ref.dtype)


def la_forward(x_l, x_g,
               w_local, g_local, b_local,
               w_act, g_act, b_act,
               w_global, g_global, b_global,
               *, eps=1e-8, store_dtype=jnp.float32):
    """Pallas forward of TDANet's LA block.  x_l: (B, N, T); x_g: (B, N, Tg).

    store_dtype controls the precision of stored conv intermediates and of the
    MXU operands on the general (groups=1 / K>1) path; GroupNorm statistics and
    all accumulation stay f32.  The typical LA config (inp==oup, K=1) takes a
    fully fused fast path with no stored intermediates at all.
    """
    B, n_in, T = x_l.shape
    c_out, c_in_g, K = w_local.shape
    assert K % 2 == 1, "even kernel sizes change the conv output length (unsupported in LA)"
    groups = n_in if (c_in_g == 1 and c_out == n_in) else 1   # depthwise iff inp == oup
    Tg = x_g.shape[2]
    f32 = jnp.float32

    fast_path = (groups != 1) and (K == 1)

    if fast_path:
        # K=1 depthwise: conv is a per-channel scale, so GroupNorm stats fold onto
        # per-channel sums of the raw inputs and the conv weight folds into the
        # GroupNorm scale -> no conv pass, no HBM round trip of any intermediate.
        xl32 = x_l.astype(f32)
        xg32 = x_g.astype(f32)
        s_l = jnp.sum(xl32, axis=2)
        q_l = jnp.sum(xl32 * xl32, axis=2)
        s_g = jnp.sum(xg32, axis=2)
        q_g = jnp.sum(xg32 * xg32, axis=2)

        def folded(sums, sqs, count, w_ch, gamma, beta):
            ssum = jnp.sum(sums * w_ch[None, :], axis=1)
            ssq = jnp.sum(sqs * (w_ch * w_ch)[None, :], axis=1)
            sc, sh = _gn_scale_shift(ssum, ssq, count, gamma, beta, eps)
            return sc * w_ch[None, :], sh           # fold the conv weight into the scale

        wl = w_local[:, 0, 0].astype(f32)
        wa = w_act[:, 0, 0].astype(f32)
        wg = w_global[:, 0, 0].astype(f32)
        sc_l, sh_l = folded(s_l, q_l, c_out * T, wl, g_local, b_local)
        sc_a, sh_a = folded(s_g, q_g, c_out * Tg, wa, g_act, b_act)
        sc_g, sh_g = folded(s_g, q_g, c_out * Tg, wg, g_global, b_global)

        tg_rows = _round_up(Tg, 128)
        glob_dtype = x_g.dtype
        y_glob = jnp.pad(x_g, ((0, 0), (0, 0), (0, tg_rows - Tg)))[:, None]  # (B,1,C,tg_rows)
        n_global = 1

        bpc = c_out * 2 * _itemsize(x_l.dtype) + tg_rows * _itemsize(glob_dtype)
        t_tile = _pick_t_tile(T, bpc)
        t_pad = _round_up(T, t_tile)
        y_local = jnp.pad(x_l, ((0, 0), (0, 0), (0, t_pad - T)))[:, None]    # (B,1,C,t_pad)
    else:
        # Act + global branches share x_g -> fused into ONE conv pass (x_g is
        # im2col'd once and read from HBM once).
        y_glob, stats_g, tg_rows, _ = _conv_raw_stats(
            x_g, [w_act, w_global], groups=groups, store_dtype=store_dtype)
        glob_dtype = store_dtype
        n_global = 2

        rows_x = n_in * K
        bpc = max(
            rows_x * _itemsize(store_dtype) + c_out * _itemsize(store_dtype) + 8 * 4,
            c_out * (_itemsize(store_dtype) + _itemsize(x_l.dtype))
            + tg_rows * _itemsize(store_dtype),
        )
        t_tile = _pick_t_tile(T, bpc)
        y_local, stats_l, t_pad, _ = _conv_raw_stats(
            x_l, [w_local], groups=groups, store_dtype=store_dtype, t_tile=t_tile)

        sc_l, sh_l = _gn_scale_shift(stats_l[0][0], stats_l[0][1], c_out * T,
                                     g_local, b_local, eps)
        sc_a, sh_a = _gn_scale_shift(stats_g[0][0], stats_g[0][1], c_out * Tg,
                                     g_act, b_act, eps)
        sc_g, sh_g = _gn_scale_shift(stats_g[1][0], stats_g[1][1], c_out * Tg,
                                     g_global, b_global, eps)

    # Per-(sample, channel) affine params, lane-padded to 128 for dense loads.
    params = jnp.stack([sc_l, sh_l, sc_a, sh_a, sc_g, sh_g], axis=-1).astype(f32)  # (B,C,6)
    params = jnp.pad(params, ((0, 0), (0, 0), (0, 128 - params.shape[-1])))

    # Nearest-neighbour upsample (F.interpolate mode='nearest') done inside the
    # fuse pass as a one-hot selection matmul against the low-resolution
    # tensors; the per-channel affine and the sigmoid commute with it.
    n_t = t_pad // t_tile
    t_sel = n_t * t_tile
    t_idx = jnp.arange(t_sel)
    src = jnp.where(t_idx < T, jnp.minimum((t_idx * Tg) // T, Tg - 1), tg_rows)
    sel = (jnp.arange(tg_rows)[:, None] == src[None, :]).astype(glob_dtype)  # (tg_rows, t_sel)

    fuse = functools.partial(_fuse_kernel, n_global=n_global)
    out = pl.pallas_call(
        fuse,
        out_shape=jax.ShapeDtypeStruct((B, c_out, t_pad), x_l.dtype),
        grid=(B, n_t),
        in_specs=[
            pl.BlockSpec((1, c_out, 128), lambda b, j: (b, 0, 0)),
            pl.BlockSpec((1, 1, c_out, t_tile), lambda b, j: (b, 0, 0, j)),
            pl.BlockSpec((1, n_global, c_out, tg_rows), lambda b, j: (b, 0, 0, 0)),
            pl.BlockSpec((tg_rows, t_tile), lambda b, j: (0, j)),
        ],
        out_specs=pl.BlockSpec((1, c_out, t_tile), lambda b, j: (b, 0, j)),
        compiler_params=pltpu.CompilerParams(
            dimension_semantics=("parallel", "parallel"),
            vmem_limit_bytes=_VMEM_LIMIT,
        ),
    )(params, y_local, y_glob, sel)

    if t_pad != T:
        # TODO(synk): a masked final-tile store would remove this small XLA slice.
        out = out[:, :, :T]
    return out


# -----------------------------------------------------------------------------
# Pure-JAX reference (mirrors the PyTorch LA forward)
# -----------------------------------------------------------------------------
def _conv_norm_ref(x, w, gamma, beta, *, groups, eps=1e-8):
    K = w.shape[-1]
    pad = (K - 1) // 2
    y = jax.lax.conv_general_dilated(
        x, w, window_strides=(1,), padding=[(pad, pad)],
        dimension_numbers=("NCH", "OIH", "NCH"), feature_group_count=groups)
    mean = jnp.mean(y, axis=(1, 2), keepdims=True)
    var = jnp.mean((y - mean) ** 2, axis=(1, 2), keepdims=True)
    y = (y - mean) / jnp.sqrt(var + eps)
    return y * gamma[None, :, None] + beta[None, :, None]


def la_reference(x_l, x_g, w_l, g_l, b_l, w_a, g_a, b_a, w_g, g_g, b_g, *, eps=1e-8):
    B, n_in, T = x_l.shape
    c_out, c_in_g, _ = w_l.shape
    groups = n_in if (c_in_g == 1 and c_out == n_in) else 1
    t_g = x_g.shape[2]
    local_feat = _conv_norm_ref(x_l, w_l, g_l, b_l, groups=groups, eps=eps)
    global_act = _conv_norm_ref(x_g, w_a, g_a, b_a, groups=groups, eps=eps)
    global_feat = _conv_norm_ref(x_g, w_g, g_g, b_g, groups=groups, eps=eps)
    idx = jnp.minimum((jnp.arange(T) * t_g) // T, t_g - 1)
    sig_act = jnp.take(jax.nn.sigmoid(global_act), idx, axis=2)
    global_up = jnp.take(global_feat, idx, axis=2)
    return local_feat * sig_act + global_up


if __name__ == "__main__":
    def run_case(key, B, n_in, n_out, K, T, Tg, store_dtype=jnp.float32,
                 rtol=1e-4, atol=1e-4):
        ks = jax.random.split(key, 8)
        groups = n_in if n_in == n_out else 1
        c_in_g = n_in // groups
        x_l = jax.random.normal(ks[0], (B, n_in, T), jnp.float32)
        x_g = jax.random.normal(ks[1], (B, n_in, Tg), jnp.float32)

        def conv_w(k):
            return 0.3 * jax.random.normal(k, (n_out, c_in_g, K), jnp.float32)

        def affine(k):
            k1, k2 = jax.random.split(k)
            return (1.0 + 0.1 * jax.random.normal(k1, (n_out,), jnp.float32),
                    0.1 * jax.random.normal(k2, (n_out,), jnp.float32))

        w_l, w_a, w_g = conv_w(ks[2]), conv_w(ks[3]), conv_w(ks[4])
        g_l, b_l = affine(ks[5])
        g_a, b_a = affine(ks[6])
        g_g, b_g = affine(ks[7])

        out = la_forward(x_l, x_g, w_l, g_l, b_l, w_a, g_a, b_a, w_g, g_g, b_g,
                         store_dtype=store_dtype)
        out = jax.block_until_ready(out)
        ref = la_reference(x_l, x_g, w_l, g_l, b_l, w_a, g_a, b_a, w_g, g_g, b_g)
        np.testing.assert_allclose(np.asarray(out, dtype=np.float32),
                                   np.asarray(ref), rtol=rtol, atol=atol)

    key = jax.random.PRNGKey(0)
    k1, k2, k3, k4 = jax.random.split(key, 4)
    # Typical LA config: inp == oup -> depthwise, kernel=1 -> fully fused fast path.
    run_case(k1, B=2, n_in=8, n_out=8, K=1, T=16, Tg=4)
    # inp != oup -> groups=1 standard conv (folded-K im2col MXU path), f32.
    run_case(k2, B=2, n_in=4, n_out=8, K=3, T=16, Tg=8)
    # Depthwise with K>1 -> general path, per-channel FMA kernel, f32.
    run_case(k3, B=2, n_in=8, n_out=8, K=3, T=16, Tg=8)
    # Reduced-precision mode: bf16 intermediates + bf16 MXU operands (f32 stats
    # and accumulation).  Looser tolerance reflects bf16 storage/operand rounding.
    run_case(k4, B=2, n_in=4, n_out=8, K=3, T=16, Tg=8,
             store_dtype=jnp.bfloat16, rtol=3e-2, atol=8e-2)

    print("KERNEL_OK")
</pallas_src>

<mosaic_0001>
module attributes {stable_mosaic.version = 11 : i64} {
  func.func @_fuse_kernel(%arg0: i32, %arg1: i32, %arg2: memref<1x8x128xf32, #tpu.memory_space<vmem>>, %arg3: memref<1x1x8x128xf32, #tpu.memory_space<vmem>>, %arg4: memref<1x1x8x128xf32, #tpu.memory_space<vmem>>, %arg5: memref<128x128xf32, #tpu.memory_space<vmem>>, %arg6: memref<1x8x128xf32, #tpu.memory_space<vmem>>) attributes {dimension_semantics = [#tpu.dimension_semantics<parallel>, #tpu.dimension_semantics<parallel>], iteration_bounds = array<i64: 2, 1>, scalar_prefetch = 0 : i64, scratch_operands = 0 : i64, tpu.core_type = #tpu.core_type<tc>, window_params = [{transform_indices = @transform_0, window_bounds = array<i64: 1, 8, 128>}, {transform_indices = @transform_1, window_bounds = array<i64: 1, 1, 8, 128>}, {transform_indices = @transform_2, window_bounds = array<i64: 1, 1, 8, 128>}, {transform_indices = @transform_3, window_bounds = array<i64: 128, 128>}, {transform_indices = @transform_4, window_bounds = array<i64: 1, 8, 128>}]} {
    %c0 = arith.constant 0 : index
    %c0_0 = arith.constant 0 : index
    %c0_1 = arith.constant 0 : index
    %0 = vector.load %arg2[%c0, %c0_0, %c0_1] : memref<1x8x128xf32, #tpu.memory_space<vmem>>, vector<1x8x128xf32>
    %1 = vector.shape_cast %0 : vector<1x8x128xf32> to vector<8x128xf32>
    %c0_2 = arith.constant 0 : index
    %c0_3 = arith.constant 0 : index
    %c0_4 = arith.constant 0 : index
    %c0_5 = arith.constant 0 : index
    %2 = vector.load %arg3[%c0_2, %c0_3, %c0_4, %c0_5] : memref<1x1x8x128xf32, #tpu.memory_space<vmem>>, vector<1x1x8x128xf32>
    %3 = vector.shape_cast %2 : vector<1x1x8x128xf32> to vector<8x128xf32>
    %c0_6 = arith.constant 0 : index
    %c0_7 = arith.constant 0 : index
    %4 = vector.load %arg5[%c0_6, %c0_7] : memref<128x128xf32, #tpu.memory_space<vmem>>, vector<128x128xf32>
    %c0_8 = arith.constant 0 : index
    %c0_9 = arith.constant 0 : index
    %c0_10 = arith.constant 0 : index
    %c0_11 = arith.constant 0 : index
    %5 = vector.load %arg4[%c0_8, %c0_9, %c0_10, %c0_11] : memref<1x1x8x128xf32, #tpu.memory_space<vmem>>, vector<1x1x8x128xf32>
    %6 = vector.shape_cast %5 : vector<1x1x8x128xf32> to vector<8x128xf32>
    %cst = arith.constant dense<0.000000e+00> : vector<8x128xf32>
    %7 = tpu.matmul %6, %4, %cst {dimension_numbers = #tpu.dot_dimension_numbers<[1], [0], [0], [1], [0, 0, 1, 1], [], []>} : vector<8x128xf32>, vector<128x128xf32>, vector<8x128xf32> -> vector<8x128xf32>
    %8 = vector.extract_strided_slice %1 {offsets = [0, 0], sizes = [8, 1], strides = [1, 1]} : vector<8x128xf32> to vector<8x1xf32>
    %9 = vector.broadcast %8 : vector<8x1xf32> to vector<8x128xf32>
    %10 = arith.mulf %3, %9 : vector<8x128xf32>
    %11 = vector.extract_strided_slice %1 {offsets = [0, 1], sizes = [8, 1], strides = [1, 1]} : vector<8x128xf32> to vector<8x1xf32>
    %12 = vector.broadcast %11 : vector<8x1xf32> to vector<8x128xf32>
    %13 = arith.addf %10, %12 : vector<8x128xf32>
    %14 = vector.extract_strided_slice %1 {offsets = [0, 2], sizes = [8, 1], strides = [1, 1]} : vector<8x128xf32> to vector<8x1xf32>
    %15 = vector.broadcast %14 : vector<8x1xf32> to vector<8x128xf32>
    %16 = arith.mulf %7, %15 : vector<8x128xf32>
    %17 = vector.extract_strided_slice %1 {offsets = [0, 3], sizes = [8, 1], strides = [1, 1]} : vector<8x128xf32> to vector<8x1xf32>
    %18 = vector.broadcast %17 : vector<8x1xf32> to vector<8x128xf32>
    %19 = arith.addf %16, %18 : vector<8x128xf32>
    %20 = arith.negf %19 : vector<8x128xf32>
    %21 = math.exp %20 : vector<8x128xf32>
    %cst_12 = arith.constant 1.000000e+00 : f32
    %22 = vector.broadcast %cst_12 : f32 to vector<8x128xf32>
    %23 = arith.addf %22, %21 : vector<8x128xf32>
    %24 = arith.divf %22, %23 : vector<8x128xf32>
    %25 = vector.extract_strided_slice %1 {offsets = [0, 4], sizes = [8, 1], strides = [1, 1]} : vector<8x128xf32> to vector<8x1xf32>
    %26 = vector.broadcast %25 : vector<8x1xf32> to vector<8x128xf32>
    %27 = arith.mulf %7, %26 : vector<8x128xf32>
    %28 = vector.extract_strided_slice %1 {offsets = [0, 5], sizes = [8, 1], strides = [1, 1]} : vector<8x128xf32> to vector<8x1xf32>
    %29 = vector.broadcast %28 : vector<8x1xf32> to vector<8x128xf32>
    %30 = arith.addf %27, %29 : vector<8x128xf32>
    %31 = arith.mulf %13, %24 : vector<8x128xf32>
    %32 = arith.addf %31, %30 : vector<8x128xf32>
    %c0_13 = arith.constant 0 : index
    %c0_14 = arith.constant 0 : index
    %c0_15 = arith.constant 0 : index
    %33 = vector.load %arg6[%c0_13, %c0_14, %c0_15] : memref<1x8x128xf32, #tpu.memory_space<vmem>>, vector<1x8x128xf32>
    %34 = vector.shape_cast %33 : vector<1x8x128xf32> to vector<8x128xf32>
    %35 = vector.shape_cast %32 : vector<8x128xf32> to vector<1x8x128xf32>
    tpu.vector_store %arg6[%c0_13, %c0_14, %c0_15], %35 {strides = array<i32>} : memref<1x8x128xf32, #tpu.memory_space<vmem>>, vector<1x8x128xf32>,
    return
  }
  func.func @transform_0(%arg0: i32, %arg1: i32) -> (i32, i32, i32) {
    %c0_i32 = arith.constant 0 : i32
    %c0_i32_0 = arith.constant 0 : i32
    %c0_i32_1 = arith.constant 0 : i32
    return %arg0, %c0_i32, %c0_i32_0 : i32, i32, i32
  }
  func.func @transform_1(%arg0: i32, %arg1: i32) -> (i32, i32, i32, i32) {
    %c0_i32 = arith.constant 0 : i32
    %c0_i32_0 = arith.constant 0 : i32
    %c0_i32_1 = arith.constant 0 : i32
    return %arg0, %c0_i32, %c0_i32_0, %arg1 : i32, i32, i32, i32
  }
  func.func @transform_2(%arg0: i32, %arg1: i32) -> (i32, i32, i32, i32) {
    %c0_i32 = arith.constant 0 : i32
    %c0_i32_0 = arith.constant 0 : i32
    %c0_i32_1 = arith.constant 0 : i32
    %c0_i32_2 = arith.constant 0 : i32
    return %arg0, %c0_i32, %c0_i32_0, %c0_i32_1 : i32, i32, i32, i32
  }
  func.func @transform_3(%arg0: i32, %arg1: i32) -> (i32, i32) {
    %c0_i32 = arith.constant 0 : i32
    %c0_i32_0 = arith.constant 0 : i32
    return %c0_i32, %arg1 : i32, i32
  }
  func.func @transform_4(%arg0: i32, %arg1: i32) -> (i32, i32, i32) {
    %c0_i32 = arith.constant 0 : i32
    %c0_i32_0 = arith.constant 0 : i32
    return %arg0, %c0_i32, %arg1 : i32, i32, i32
  }
}

</mosaic_0001>

<llo_original>
// kernel: tpu_custom_call.1
$region0: #{tpu_custom_call.1}
  #allocation0 [shape = 'u32[]', space=smem, size = 0x4, offset = 0x4, fixed_abs, tag = 'smem constant byte address 0x4 - core index']
  #allocation1 [shape = 'u32[144,128]{1,0:T(1,128)}', space=vmem, size = 0x12000, scoped, tag = 'internal scratch']
  %s0 = inlined_call_operand.hbm [shape: f32[2,8,128], index: 0, kind: input, shape index: {}]
  %s1 = inlined_call_operand.hbm [shape: f32[2,1,8,128], index: 1, kind: input, shape index: {}]
  %s2 = inlined_call_operand.hbm [shape: f32[2,1,8,128], index: 2, kind: input, shape index: {}]
  %s3 = inlined_call_operand.hbm [shape: f32[128,128], index: 3, kind: input, shape index: {}]
  %s4 = inlined_call_operand.hbm [shape: f32[2,8,128], index: 4, kind: output, shape index: {}]
  %s5 = sld [smem:[#allocation0]]
  $region65: #{tpu_custom_call.1} parent=0
    _
  %s7 = ssub.s32 1, %s5
  %s8 = scalar_select 0, %s7, %s5
  $region1: #{tpu_custom_call.1} parent=0
    #allocation2 [shape = 'u8[8192]{0}', space=vmem, size = 0x2000, scoped, tag = 'input window, operand 0']
    #allocation3 [shape = 's32[2]{0}', space=sflag, size = 0x8, scoped, tag = 'scoped memory for tpu_custom_call.1']
    #allocation4 [shape = 's32[2]{0}', space=sflag, size = 0x8, scoped, tag = 'scoped memory for tpu_custom_call.1']
    #allocation5 [shape = 'u8[8192]{0}', space=vmem, size = 0x2000, scoped, tag = 'input window, operand 1']
    #allocation6 [shape = 's32[2]{0}', space=sflag, size = 0x8, scoped, tag = 'scoped memory for tpu_custom_call.1']
    #allocation7 [shape = 'u8[8192]{0}', space=vmem, size = 0x2000, scoped, tag = 'input window, operand 2']
    #allocation8 [shape = 'u8[65536]{0}', space=vmem, size = 0x10000, scoped, tag = 'input window, operand 3, single buffered']
    #allocation9 [shape = 's32[1]{0}', space=sflag, size = 0x4, scoped, tag = 'scoped memory for tpu_custom_call.1']
    #allocation10 [shape = 'u8[8192]{0}', space=vmem, size = 0x2000, scoped, tag = 'output window, operand 0']
    %9 = vsyncpa [#allocation3], 0
    %s10 = scalar_lea.sflag [#allocation3], 1
    %11 = vsyncpa %s10, 0
    %12 = vsyncpa [#allocation6], 0
    %s13 = scalar_lea.sflag [#allocation6], 1
    %14 = vsyncpa %s13, 0
    %15 = vsyncpa [#allocation9], 0
    %16 = vsyncpa [#allocation4], 0
    %s17 = scalar_lea.sflag [#allocation4], 1
    %18 = vsyncpa %s17, 0
    loop: start=0, step=1, limit=4
    $region2: #{tpu_custom_call.1} parent=1 // loop_pre_header
      _
    $region3: #{tpu_custom_call.1} parent=1 // loop_header
      %s20 = sphi 0, %s24
      %p21 = scmp.ge.s32.totalorder %s20, 4
      %s27 = sphi 0, %s39
      %s28 = sphi 0, %s35
      %s29 = sphi 0, %s27
      %s30 = sphi 0, %s28
      %s31 = sphi 0, %s29
      %s32 = sphi 0, %s30
      %s42 = sphi 0, %s44
      %s45 = sphi 0, %s42
      %s46 = sphi 0, %s45
      %s62 = sphi 0, %s46
      %s70 = sphi 0, %s72
      %s73 = sphi 0, %s70
      %s74 = sphi 0, %s73
      %s90 = sphi 0, %s74
      %s96 = sphi 0, %s98
      %s99 = sphi 0, %s96
      %s100 = sphi 0, %s99
      %s116 = sphi 0, %s100
      %s122 = sphi 0, %s124
      %s125 = sphi 0, %s122
      %s126 = sphi 0, %s125
      %s142 = sphi 0, %s126
      %s150 = sphi 0, %s152
      %s153 = sphi 0, %s150
      %s154 = sphi 0, %s153
      %s170 = sphi 0, %s154
    $region4: #{tpu_custom_call.1} parent=1 // loop_header_branch
      %23 = sbr.rel (%p21) target = $region8
    $region5: #{tpu_custom_call.1} parent=1 // loop_body
      %s25 = ssub.s32 %s20, 1
      %s26 = ssub.s32 %s20, 2
      %s33 = sadd.s32 1, %s28
      %p34 = scmp.ge.s32.totalorder %s33, 1
      %s35 = scalar_select %p34, 0, %s33
      %s36 = sadd.s32 1, %s27
      %s37 = scalar_select %p34, %s36, %s27
      %p38 = scmp.ge.s32.totalorder %s37, 2
      %s39 = scalar_select %p38, 0, %s37
      %s40 = ssub.s32 %s27, %s39
      %p41 = scmp.eq.s32.totalorder %s40, 0
      %s43 = sadd.s32 %s42, 1
      %s44 = scalar_select %p41, %s42, %s43
      %p47 = pneg %p41
      %p48 = scmp.eq.s32.totalorder %s20, 1
      %p49 = por %p47, %p48
      %p50 = scmp.ne.s32.totalorder %s42, %s45
      %p51 = scmp.eq.s32.totalorder %s20, 0
      %p52 = por %p50, %p51
      %p53 = scmp.ne.s32.totalorder %s42, %s45
      %p54 = scmp.eq.s32.totalorder %s25, 1
      %p55 = por %p53, %p54
      %p56 = scmp.ne.s32.totalorder %s45, %s46
      %p57 = scmp.eq.s32.totalorder %s25, 0
      %p58 = por %p56, %p57
      %p59 = scmp.ne.s32.totalorder %s45, %s46
      %p60 = scmp.eq.s32.totalorder %s26, 1
      %p61 = por %p59, %p60
      %p63 = scmp.ne.s32.totalorder %s46, %s62
      %p64 = scmp.eq.s32.totalorder %s26, 0
      %p65 = por %p63, %p64
      %s66 = ssub.s32 %s27, %s39
      %s67 = ssub.s32 %s28, %s35
      %s68 = sor.u32 %s66, %s67
      %p69 = scmp.eq.s32.totalorder %s68, 0
      %s71 = sadd.s32 %s70, 1
      %s72 = scalar_select %p69, %s70, %s71
      %p75 = pneg %p69
      %p76 = scmp.eq.s32.totalorder %s20, 1
      %p77 = por %p75, %p76
      %p78 = scmp.ne.s32.totalorder %s70, %s73
      %p79 = scmp.eq.s32.totalorder %s20, 0
      %p80 = por %p78, %p79
      %p81 = scmp.ne.s32.totalorder %s70, %s73
      %p82 = scmp.eq.s32.totalorder %s25, 1
      %p83 = por %p81, %p82
      %p84 = scmp.ne.s32.totalorder %s73, %s74
      %p85 = scmp.eq.s32.totalorder %s25, 0
      %p86 = por %p84, %p85
      %p87 = scmp.ne.s32.totalorder %s73, %s74
      %p88 = scmp.eq.s32.totalorder %s26, 1
      %p89 = por %p87, %p88
      %p91 = scmp.ne.s32.totalorder %s74, %s90
      %p92 = scmp.eq.s32.totalorder %s26, 0
      %p93 = por %p91, %p92
      %s94 = ssub.s32 %s27, %s39
      %p95 = scmp.eq.s32.totalorder %s94, 0
      %s97 = sadd.s32 %s96, 1
      %s98 = scalar_select %p95, %s96, %s97
      %p101 = pneg %p95
      %p102 = scmp.eq.s32.totalorder %s20, 1
      %p103 = por %p101, %p102
      %p104 = scmp.ne.s32.totalorder %s96, %s99
      %p105 = scmp.eq.s32.totalorder %s20, 0
      %p106 = por %p104, %p105
      %p107 = scmp.ne.s32.totalorder %s96, %s99
      %p108 = scmp.eq.s32.totalorder %s25, 1
      %p109 = por %p107, %p108
      %p110 = scmp.ne.s32.totalorder %s99, %s100
      %p111 = scmp.eq.s32.totalorder %s25, 0
      %p112 = por %p110, %p111
      %p113 = scmp.ne.s32.totalorder %s99, %s100
      %p114 = scmp.eq.s32.totalorder %s26, 1
      %p115 = por %p113, %p114
      %p117 = scmp.ne.s32.totalorder %s100, %s116
      %p118 = scmp.eq.s32.totalorder %s26, 0
      %p119 = por %p117, %p118
      %s120 = ssub.s32 %s28, %s35
      %p121 = scmp.eq.s32.totalorder %s120, 0
      %s123 = sadd.s32 %s122, 1
      %s124 = scalar_select %p121, %s122, %s123
      %p127 = pneg %p121
      %p128 = scmp.eq.s32.totalorder %s20, 1
      %p129 = por %p127, %p128
      %p130 = scmp.ne.s32.totalorder %s122, %s125
      %p131 = scmp.eq.s32.totalorder %s20, 0
      %p132 = por %p130, %p131
      %p133 = scmp.ne.s32.totalorder %s122, %s125
      %p134 = scmp.eq.s32.totalorder %s25, 1
      %p135 = por %p133, %p134
      %p136 = scmp.ne.s32.totalorder %s125, %s126
      %p137 = scmp.eq.s32.totalorder %s25, 0
      %p138 = por %p136, %p137
      %p139 = scmp.ne.s32.totalorder %s125, %s126
      %p140 = scmp.eq.s32.totalorder %s26, 1
      %p141 = por %p139, %p140
      %p143 = scmp.ne.s32.totalorder %s126, %s142
      %p144 = scmp.eq.s32.totalorder %s26, 0
      %p145 = por %p143, %p144
      %s146 = ssub.s32 %s27, %s39
      %s147 = ssub.s32 %s28, %s35
      %s148 = sor.u32 %s146, %s147
      %p149 = scmp.eq.s32.totalorder %s148, 0
      %s151 = sadd.s32 %s150, 1
      %s152 = scalar_select %p149, %s150, %s151
      %p155 = pneg %p149
      %p156 = scmp.eq.s32.totalorder %s20, 1
      %p157 = por %p155, %p156
      %p158 = scmp.ne.s32.totalorder %s150, %s153
      %p159 = scmp.eq.s32.totalorder %s20, 0
      %p160 = por %p158, %p159
      %p161 = scmp.ne.s32.totalorder %s150, %s153
      %p162 = scmp.eq.s32.totalorder %s25, 1
      %p163 = por %p161, %p162
      %p164 = scmp.ne.s32.totalorder %s153, %s154
      %p165 = scmp.eq.s32.totalorder %s25, 0
      %p166 = por %p164, %p165
      %p167 = scmp.ne.s32.totalorder %s153, %s154
      %p168 = scmp.eq.s32.totalorder %s26, 1
      %p169 = por %p167, %p168
      %p171 = scmp.ne.s32.totalorder %s154, %s170
      %p172 = scmp.eq.s32.totalorder %s26, 0
      %p173 = por %p171, %p172
      %p174 = scmp.le.s32.totalorder 1, %s20
      %p175 = scmp.lt.s32.totalorder %s20, 3
      %p176 = pnand %p174, %p175
      %p177 = pneg %p176
      // Predicated region
      $region9: #{tpu_custom_call.1} parent=5 // pred_check
        _
      $region10: #{tpu_custom_call.1} parent=5 // pred_check_branch
        %179 = sbr.rel (%p176) target = $region12
      $region11: #{tpu_custom_call.1} parent=5 // pred_region
        %s180 = ssub.s32 %s20, 1
        // Predicated region
        $region13: #{tpu_custom_call.1} parent=11 // pred_check
          %p181 = pneg %p138
        $region14: #{tpu_custom_call.1} parent=11 // pred_check_branch
          %183 = sbr.rel (%p181) target = $region16
        $region15: #{tpu_custom_call.1} parent=11 // pred_region
          %s185 = ssub.s32 2048, 2048
          %186 = vsyncadd [#allocation9], %s185
          %s187 = smul.addr %s30, 128
          %s188 = scalar_lea.hbm %s3, %s187
          %s189 = sshll.u32 [#allocation8], 4
          %s190 = int_to_ptr.vmem [resolvable:$true] %s189
          %195 = dma.hbm_to_vmem [thread:$0]  %s188, 2048, %s190, [#allocation9], 128, 128, 8
        $region16: #{tpu_custom_call.1} parent=11 // pred_fallthru
          _
      $region12: #{tpu_custom_call.1} parent=5 // pred_fallthru
        _
      %p196 = scmp.lt.s32.totalorder %s20, 2
      // Predicated region
      $region17: #{tpu_custom_call.1} parent=5 // pred_check
        %p197 = pneg %p196
      $region18: #{tpu_custom_call.1} parent=5 // pred_check_branch
        %199 = sbr.rel (%p197) target = $region20
      $region19: #{tpu_custom_call.1} parent=5 // pred_region
        // Predicated region
        $region21: #{tpu_custom_call.1} parent=19 // pred_check
          %p200 = pneg %p52
        $region22: #{tpu_custom_call.1} parent=19 // pred_check_branch
          %202 = sbr.rel (%p200) target = $region24
        $region23: #{tpu_custom_call.1} parent=19 // pred_region
          %s203 = sand.u32 %s42, 1
          %s204 = scalar_lea.sflag [#allocation3], %s203
          %s205 = sand.u32 %s42, 1
          %s206 = smul.addr %s205, 8
          %s207 = scalar_lea.vmem [#allocation2], %s206
          %s209 = ssub.s32 128, 128
          %210 = vsyncadd %s204, %s209
          %s211 = smul.addr %s27, 128
          %s212 = scalar_lea.hbm %s0, %s211
          %s214 = sshll.u32 %s207, 4
          %s215 = int_to_ptr.vmem [resolvable:$true] %s214
          %217 = dma.hbm_to_vmem [thread:$0]  %s212, 128, %s215, %s204
        $region24: #{tpu_custom_call.1} parent=19 // pred_fallthru
          _
        // Predicated region
        $region25: #{tpu_custom_call.1} parent=19 // pred_check
          %p218 = pneg %p80
        $region26: #{tpu_custom_call.1} parent=19 // pred_check_branch
          %220 = sbr.rel (%p218) target = $region28
        $region27: #{tpu_custom_call.1} parent=19 // pred_region
          %s221 = sand.u32 %s20, 1
          %s222 = scalar_lea.sflag [#allocation6], %s221
          %s223 = sand.u32 %s70, 1
          %s224 = smul.addr %s223, 8
          %s225 = scalar_lea.vmem [#allocation5], %s224
          %s227 = ssub.s32 128, 128
          %228 = vsyncadd %s222, %s227
          %s229 = sadd.s32 %s28, %s27
          %s230 = smul.addr %s229, 128
          %s231 = scalar_lea.hbm %s1, %s230
          %s233 = sshll.u32 %s225, 4
          %s234 = int_to_ptr.vmem [resolvable:$true] %s233
          %236 = dma.hbm_to_vmem [thread:$0]  %s231, 128, %s234, %s222
        $region28: #{tpu_custom_call.1} parent=19 // pred_fallthru
          _
        // Predicated region
        $region29: #{tpu_custom_call.1} parent=19 // pred_check
          %p237 = pneg %p106
        $region30: #{tpu_custom_call.1} parent=19 // pred_check_branch
          %239 = sbr.rel (%p237) target = $region32
        $region31: #{tpu_custom_call.1} parent=19 // pred_region
          %s240 = sand.u32 %s20, 1
          %s241 = scalar_lea.sflag [#allocation6], %s240
          %s242 = sand.u32 %s96, 1
          %s243 = smul.addr %s242, 8
          %s244 = scalar_lea.vmem [#allocation7], %s243
          %s246 = ssub.s32 128, 128
          %247 = vsyncadd %s241, %s246
          %s248 = smul.addr %s27, 128
          %s249 = scalar_lea.hbm %s2, %s248
          %s251 = sshll.u32 %s244, 4
          %s252 = int_to_ptr.vmem [resolvable:$true] %s251
          %254 = dma.hbm_to_vmem [thread:$0]  %s249, 128, %s252, %s241
        $region32: #{tpu_custom_call.1} parent=19 // pred_fallthru
          _
      $region20: #{tpu_custom_call.1} parent=5 // pred_fallthru
        _
      %p255 = scmp.le.s32.totalorder 1, %s20
      %p256 = scmp.lt.s32.totalorder %s20, 3
      %p257 = pnand %p255, %p256
      %p258 = pneg %p257
      // Predicated region
      $region33: #{tpu_custom_call.1} parent=5 // pred_check
        _
      $region34: #{tpu_custom_call.1} parent=5 // pred_check_branch
        %260 = sbr.rel (%p257) target = $region36
      $region35: #{tpu_custom_call.1} parent=5 // pred_region
        %s261 = ssub.s32 %s20, 1
        %s262 = sand.u32 %s45, 1
        %s263 = scalar_lea.sflag [#allocation3], %s262
        %s264 = sand.u32 %s45, 1
        %s265 = smul.addr %s264, 8
        %s266 = scalar_lea.vmem [#allocation2], %s265
        // Predicated region
        $region37: #{tpu_custom_call.1} parent=35 // pred_check
          %p267 = pneg %p58
        $region38: #{tpu_custom_call.1} parent=35 // pred_check_branch
          %269 = sbr.rel (%p267) target = $region40
        $region39: #{tpu_custom_call.1} parent=35 // pred_region
          %270 = dma.done %s263, 128
        $region40: #{tpu_custom_call.1} parent=35 // pred_fallthru
          _
        %s271 = sand.u32 %s25, 1
        %s272 = scalar_lea.sflag [#allocation6], %s271
        %s273 = sand.u32 %s73, 1
        %s274 = smul.addr %s273, 8
        %s275 = scalar_lea.vmem [#allocation5], %s274
        // Predicated region
        $region41: #{tpu_custom_call.1} parent=35 // pred_check
          %p276 = pneg %p86
        $region42: #{tpu_custom_call.1} parent=35 // pred_check_branch
          %278 = sbr.rel (%p276) target = $region44
        $region43: #{tpu_custom_call.1} parent=35 // pred_region
          %279 = dma.done %s272, 128
        $region44: #{tpu_custom_call.1} parent=35 // pred_fallthru
          _
        %s280 = sand.u32 %s25, 1
        %s281 = scalar_lea.sflag [#allocation6], %s280
        %s282 = sand.u32 %s99, 1
        %s283 = smul.addr %s282, 8
        %s284 = scalar_lea.vmem [#allocation7], %s283
        // Predicated region
        $region45: #{tpu_custom_call.1} parent=35 // pred_check
          %p285 = pneg %p112
        $region46: #{tpu_custom_call.1} parent=35 // pred_check_branch
          %287 = sbr.rel (%p285) target = $region48
        $region47: #{tpu_custom_call.1} parent=35 // pred_region
          %288 = dma.done %s281, 128
        $region48: #{tpu_custom_call.1} parent=35 // pred_fallthru
          _
        // Predicated region
        $region49: #{tpu_custom_call.1} parent=35 // pred_check
          %p289 = pneg %p138
        $region50: #{tpu_custom_call.1} parent=35 // pred_check_branch
          %291 = sbr.rel (%p289) target = $region52
        $region51: #{tpu_custom_call.1} parent=35 // pred_region
          %292 = dma.done [#allocation9], 2048
        $region52: #{tpu_custom_call.1} parent=35 // pred_fallthru
          _
        %s293 = sand.u32 %s45, 1
        %s294 = scalar_lea.sflag [#allocation3], %s293
        %s295 = sand.u32 %s45, 1
        %s296 = smul.addr %s295, 8
        %s297 = scalar_lea.vmem [#allocation2], %s296
        %p298 = pneg %p58
        %p299 = pneg %p55
        %s300 = sand.u32 %s25, 1
        %s301 = scalar_lea.sflag [#allocation6], %s300
        %s302 = sand.u32 %s73, 1
        %s303 = smul.addr %s302, 8
        %s304 = scalar_lea.vmem [#allocation5], %s303
        %p305 = pneg %p86
        %p306 = pneg %p83
        %s307 = sand.u32 %s25, 1
        %s308 = scalar_lea.sflag [#allocation6], %s307
        %s309 = sand.u32 %s99, 1
        %s310 = smul.addr %s309, 8
        %s311 = scalar_lea.vmem [#allocation7], %s310
        %p312 = pneg %p112
        %p313 = pneg %p109
        %p314 = pneg %p138
        %p315 = pneg %p135
        %p316 = pneg %p166
        %p317 = pneg %p163
        %s318 = sand.u32 %s153, 1
        %s319 = scalar_lea.sflag [#allocation4], %s318
        %s320 = sand.u32 %s153, 1
        %s321 = smul.addr %s320, 8
        %s322 = scalar_lea.vmem [#allocation10], %s321
        %v323 = vld [vmem:[%s266] sm:$0xff]
        %v324 = vld [vmem:[%s275] sm:$0xff]
        %v325 = vld [vmem:[#allocation8] sm:$0xff]
        %v326 = vld [vmem:[#allocation8 + $0x8] sm:$0xff]
        %v327 = vld [vmem:[#allocation8 + $0x10] sm:$0xff]
        %v328 = vld [vmem:[#allocation8 + $0x18] sm:$0xff]
        %v329 = vld [vmem:[#allocation8 + $0x20] sm:$0xff]
        %v330 = vld [vmem:[#allocation8 + $0x28] sm:$0xff]
        %v331 = vld [vmem:[#allocation8 + $0x30] sm:$0xff]
        %v332 = vld [vmem:[#allocation8 + $0x38] sm:$0xff]
        %v333 = vld [vmem:[#allocation8 + $0x40] sm:$0xff]
        %v334 = vld [vmem:[#allocation8 + $0x48] sm:$0xff]
        %v335 = vld [vmem:[#allocation8 + $0x50] sm:$0xff]
        %v336 = vld [vmem:[#allocation8 + $0x58] sm:$0xff]
        %v337 = vld [vmem:[#allocation8 + $0x60] sm:$0xff]
        %v338 = vld [vmem:[#allocation8 + $0x68] sm:$0xff]
        %v339 = vld [vmem:[#allocation8 + $0x70] sm:$0xff]
        %v340 = vld [vmem:[#allocation8 + $0x78] sm:$0xff]
        %v341 = vld [vmem:[%s284] sm:$0xff]
        %342 = vmatprep.subr.mxu0 0.0
        %343 = vmatpush1.msra.mxu0 %v325
        %344 = vmatprep.subr.mxu0 0.0
        %345 = vmatpush1.msra.mxu0 %v326
        %346 = vmatprep.subr.mxu0 0.0
        %347 = vmatpush1.msra.mxu0 %v327
        %348 = vmatprep.subr.mxu0 0.0
        %349 = vmatpush1.msra.mxu0 %v328
        %350 = vmatprep.subr.mxu0 0.0
        %351 = vmatpush1.msra.mxu0 %v329
        %352 = vmatprep.subr.mxu0 0.0
        %353 = vmatpush1.msra.mxu0 %v330
        %354 = vmatprep.subr.mxu0 0.0
        %355 = vmatpush1.msra.mxu0 %v331
        %356 = vmatprep.subr.mxu0 0.0
        %357 = vmatpush1.msra.mxu0 %v332
        %358 = vmatprep.subr.mxu0 0.0
        %359 = vmatpush1.msra.mxu0 %v333
        %360 = vmatprep.subr.mxu0 0.0
        %361 = vmatpush1.msra.mxu0 %v334
        %362 = vmatprep.subr.mxu0 0.0
        %363 = vmatpush1.msra.mxu0 %v335
        %364 = vmatprep.subr.mxu0 0.0
        %365 = vmatpush1.msra.mxu0 %v336
        %366 = vmatprep.subr.mxu0 0.0
        %367 = vmatpush1.msra.mxu0 %v337
        %368 = vmatprep.subr.mxu0 0.0
        %369 = vmatpush1.msra.mxu0 %v338
        %370 = vmatprep.subr.mxu0 0.0
        %371 = vmatpush1.msra.mxu0 %v339
        %372 = vmatprep.subr.mxu0 0.0
        %373 = vmatpush1.msra.mxu0 %v340
        %374 = vmatprep.subr.mxu0 0.0
        %375 = vmatpush1.msra.mxu0 0.0
        %376 = vmatprep.subr.mxu0 0.0
        %377 = vmatpush1.msra.mxu0 0.0
        %378 = vmatprep.subr.mxu0 0.0
        %379 = vmatpush1.msra.mxu0 0.0
        %380 = vmatprep.subr.mxu0 0.0
        %381 = vmatpush1.msra.mxu0 0.0
        %382 = vmatprep.subr.mxu0 0.0
        %383 = vmatpush1.msra.mxu0 0.0
        %384 = vmatprep.subr.mxu0 0.0
        %385 = vmatpush1.msra.mxu0 0.0
        %386 = vmatprep.subr.mxu0 0.0
        %387 = vmatpush1.msra.mxu0 0.0
        %388 = vmatprep.subr.mxu0 0.0
        %389 = vmatpush1.msra.mxu0 0.0
        %390 = vmatprep.subr.mxu0 0.0
        %391 = vmatpush1.msra.mxu0 0.0
        %392 = vmatprep.subr.mxu0 0.0
        %393 = vmatpush1.msra.mxu0 0.0
        %394 = vmatprep.subr.mxu0 0.0
        %395 = vmatpush1.msra.mxu0 0.0
        %396 = vmatprep.subr.mxu0 0.0
        %397 = vmatpush1.msra.mxu0 0.0
        %398 = vmatprep.subr.mxu0 0.0
        %399 = vmatpush1.msra.mxu0 0.0
        %400 = vmatprep.subr.mxu0 0.0
        %401 = vmatpush1.msra.mxu0 0.0
        %402 = vmatprep.subr.mxu0 0.0
        %403 = vmatpush1.msra.mxu0 0.0
        %404 = vmatprep.subr.mxu0 0.0
        %405 = vmatpush1.msra.mxu0 0.0
        %406 = vmatprep.mubr.f32.mxu0 0.0
        %407 = vmatmul.mubr.f32.gmra.mrb[0].mxu0 %v341
        %v408 = vpop.f32.mrb[0].mxu0
        %v409 = vadd.f32 0.0, %v408
        %v410 = vpop.f32.mrb[0].mxu0
        %411 = vdwg.mxu0
        %413 = vset.pattern.permute.xlu0 0
        %414 = vperm.xlu0 %413, %v323
        %v415 = vpop.permute.xlu0 %414
        %v417 = vmul.f32 %v324, %v415
        %418 = vset.pattern.permute.xlu0 1
        %419 = vperm.xlu0 %418, %v323
        %v420 = vpop.permute.xlu0 %419
        %v422 = vadd.f32 %v417, %v420
        %423 = vset.pattern.permute.xlu0 2
        %424 = vperm.xlu0 %423, %v323
        %v425 = vpop.permute.xlu0 %424
        %v427 = vmul.f32 %v409, %v425
        %428 = vset.pattern.permute.xlu0 3
        %429 = vperm.xlu0 %428, %v323
        %v430 = vpop.permute.xlu0 %429
        %v432 = vadd.f32 %v427, %v430
        %v433 = vxor.u32 %v432, 2147483648
        %v434 = vmul.f32 %v433, 1.442695
        %v435 = vpow.pop %v434
        %v436 = vadd.f32 %v435, 1.0
        %v437 = vrcp.pop %v436
        %v438 = vmul.f32 1.0, %v437
        %439 = vset.pattern.permute.xlu0 4
        %440 = vperm.xlu0 %439, %v323
        %v441 = vpop.permute.xlu0 %440
        %v443 = vmul.f32 %v409, %v441
        %444 = vset.pattern.permute.xlu0 5
        %445 = vperm.xlu0 %444, %v323
        %v446 = vpop.permute.xlu0 %445
        %v448 = vadd.f32 %v443, %v446
        %v449 = vmul.f32 %v422, %v438
        %v450 = vadd.f32 %v449, %v448
        %451 = vst [vmem:[%s322] sm:$0xff] %v450
        %s452 = sand.u32 %s153, 1
        %s453 = scalar_lea.sflag [#allocation4], %s452
        %s454 = sand.u32 %s153, 1
        %s455 = smul.addr %s454, 8
        %s456 = scalar_lea.vmem [#allocation10], %s455
        // Predicated region
        $region53: #{tpu_custom_call.1} parent=35 // pred_check
          %p457 = pneg %p163
        $region54: #{tpu_custom_call.1} parent=35 // pred_check_branch
          %459 = sbr.rel (%p457) target = $region56
        $region55: #{tpu_custom_call.1} parent=35 // pred_region
          %s461 = ssub.s32 128, 128
          %462 = vsyncadd %s453, %s461
          %s463 = sadd.s32 %s30, %s29
          %s464 = smul.addr %s463, 128
          %s465 = scalar_lea.hbm %s4, %s464
          %s467 = sshll.u32 %s456, 4
          %s468 = int_to_ptr.vmem [resolvable:$true] %s467
          %470 = dma.vmem_to_hbm [thread:$0]  %s468, 128, %s465, %s453
        $region56: #{tpu_custom_call.1} parent=35 // pred_fallthru
          _
      $region36: #{tpu_custom_call.1} parent=5 // pred_fallthru
        _
      %p471 = scmp.le.s32.totalorder 2, %s20
      // Predicated region
      $region57: #{tpu_custom_call.1} parent=5 // pred_check
        %p472 = pneg %p471
      $region58: #{tpu_custom_call.1} parent=5 // pred_check_branch
        %474 = sbr.rel (%p472) target = $region60
      $region59: #{tpu_custom_call.1} parent=5 // pred_region
        %s475 = ssub.s32 %s20, 2
        // Predicated region
        $region61: #{tpu_custom_call.1} parent=59 // pred_check
          %p476 = pneg %p169
        $region62: #{tpu_custom_call.1} parent=59 // pred_check_branch
          %478 = sbr.rel (%p476) target = $region64
        $region63: #{tpu_custom_call.1} parent=59 // pred_region
          %s479 = sand.u32 %s154, 1
          %s480 = scalar_lea.sflag [#allocation4], %s479
          %s481 = sand.u32 %s154, 1
          %s482 = smul.addr %s481, 8
          %s483 = scalar_lea.vmem [#allocation10], %s482
          %484 = dma.done %s480, 128
        $region64: #{tpu_custom_call.1} parent=59 // pred_fallthru
          _
      $region60: #{tpu_custom_call.1} parent=5 // pred_fallthru
        _
    $region6: #{tpu_custom_call.1} parent=1 // loop_footer
      %s24 = sadd.s32 1, %s20
    $region7: #{tpu_custom_call.1} parent=1 // loop_footer_branch
      %19 = sbr.rel target = $region3
    $region8: #{tpu_custom_call.1} parent=1 // loop_exit
      _
    %485 = vsyncpa [#allocation3], 1
    %s486 = scalar_lea.sflag [#allocation3], 1
    %487 = vsyncpa %s486, 1
    %488 = vsyncpa [#allocation6], 1
    %s489 = scalar_lea.sflag [#allocation6], 1
    %490 = vsyncpa %s489, 1
    %491 = vsyncpa [#allocation9], 1
    %492 = vsyncpa [#allocation4], 1
    %s493 = scalar_lea.sflag [#allocation4], 1
    %494 = vsyncpa %s493, 1

</llo_original>
